<compile_context>
chip_gen: v7x
topology: tpu7x:2x2x1
jax: 0.10.0
libtpu: 0.0.40
codegen_flags: <defaults>
</compile_context>

<pallas_src>
import jax
import jax.numpy as jnp
from jax.experimental import pallas as pl
from jax.experimental.pallas import tpu as pltpu


def _dma_copy_kernel(x_hbm, o_hbm, sem):
    # One whole-array HBM->HBM DMA (identity copy). No VMEM staging, no grid.
    cp = pltpu.make_async_copy(x_hbm, o_hbm, sem)
    cp.start()
    cp.wait()


def unflatten(x, channel, length):
    """Pallas equivalent of Unflatten(channel, length).forward(x).

    Accepts any contiguous array whose trailing dims flatten to
    channel*length (mirrors torch .view). Returns (B, channel, length).
    """
    B = x.shape[0]
    flat = channel * length
    feat = 1
    for d in x.shape[1:]:
        feat *= d
    assert feat == flat, (
        f"input features {feat} != channel*length {flat}"
    )

    # Metadata-only view (equivalent of torch .view on contiguous data).
    x3 = jnp.reshape(x, (B, channel, length))

    nbytes = B * flat * jnp.dtype(x.dtype).itemsize

    out = pl.pallas_call(
        _dma_copy_kernel,
        out_shape=jax.ShapeDtypeStruct((B, channel, length), x.dtype),
        in_specs=[pl.BlockSpec(memory_space=pl.ANY)],
        out_specs=pl.BlockSpec(memory_space=pl.ANY),
        scratch_shapes=[pltpu.SemaphoreType.DMA(())],
        cost_estimate=pl.CostEstimate(
            flops=0, transcendentals=0, bytes_accessed=2 * nbytes
        ),
    )(x3)
    return out


if __name__ == "__main__":
    key = jax.random.PRNGKey(0)

    # Module parameters (Unflatten has no learnable weights).
    channel, length = 4, 64
    flat = channel * length

    # --- Case 1: canonical (B, C*L) input, lane-friendly flat (256) ---
    B = 2
    x = jax.random.normal(key, (B, flat), dtype=jnp.float32)
    out = jax.block_until_ready(unflatten(x, channel, length))
    ref = jnp.reshape(x, (B, channel, length))
    assert out.shape == (B, channel, length)
    assert out.dtype == x.dtype
    assert bool(jnp.array_equal(out, ref))

    # --- Case 2: channel*length NOT a multiple of 128 (no padding needed
    #     with the DMA path), bf16 dtype ---
    c2, l2 = 3, 50
    B2 = 5
    x2 = jax.random.normal(
        jax.random.PRNGKey(1), (B2, c2 * l2), dtype=jnp.bfloat16
    )
    out2 = jax.block_until_ready(unflatten(x2, c2, l2))
    ref2 = jnp.reshape(x2, (B2, c2, l2))
    assert bool(jnp.array_equal(out2, ref2))

    # --- Case 3: higher-rank contiguous input (B, C, H, W) viewed to
    #     (B, channel, length), like torch .view on any contiguous tensor ---
    x3 = jax.random.normal(
        jax.random.PRNGKey(2), (2, 4, 8, 8), dtype=jnp.float32
    )
    out3 = jax.block_until_ready(unflatten(x3, channel, length))
    ref3 = jnp.reshape(x3, (2, channel, length))
    assert bool(jnp.array_equal(out3, ref3))

    print("KERNEL_OK")
</pallas_src>

<mosaic_0001>
module attributes {stable_mosaic.version = 11 : i64} {
  func.func @_dma_copy_kernel(%arg0: memref<2x4x64xf32, #tpu.memory_space<any>>, %arg1: memref<2x4x64xf32, #tpu.memory_space<any>>, %arg2: memref<!tpu.dma_semaphore, #tpu.memory_space<semaphore_mem>>) attributes {dimension_semantics = [], scalar_prefetch = 0 : i64, scratch_operands = 1 : i64, tpu.core_type = #tpu.core_type<tc>} {
    tpu.enqueue_dma source(%arg0 : memref<2x4x64xf32, #tpu.memory_space<any>>) target(%arg1 : memref<2x4x64xf32, #tpu.memory_space<any>>) target_semaphore(%arg2 : memref<!tpu.dma_semaphore, #tpu.memory_space<semaphore_mem>>)
    tpu.wait_dma2 semaphore(%arg2 : memref<!tpu.dma_semaphore, #tpu.memory_space<semaphore_mem>>) src(%arg0 : memref<2x4x64xf32, #tpu.memory_space<any>>) dst(%arg1 : memref<2x4x64xf32, #tpu.memory_space<any>>)
    return
  }
}

</mosaic_0001>

<llo_original>
// kernel: tpu_custom_call.1
$region0: #{tpu_custom_call.1}
  #allocation0 [shape = 'u32[]', space=smem, size = 0x4, offset = 0x4, fixed_abs, tag = 'smem constant byte address 0x4 - core index']
  #allocation1 [shape = 'u32[144,128]{1,0:T(1,128)}', space=vmem, size = 0x12000, scoped, tag = 'internal scratch']
  #allocation2 [shape = 's32[1]{0}', space=sflag, size = 0x4, scoped, tag = 'scratch operand']
  #allocation3 [shape = 's32[]', space=sflag, size = 0x4, offset = 0, fixed_abs, tag = 'sflag constant byte address 0x0 - dummy sync flag']
  #allocation4 [shape = 'u32[0]{0}', space=smem, size = 0, offset = 0, fixed_abs, tag = 'smem constant byte address 0x0 - null']
  %s0 = inlined_call_operand.hbm [shape: f32[2,4,64], index: 0, kind: input, shape index: {}]
  %s1 = inlined_call_operand.hbm [shape: f32[2,4,64], index: 1, kind: output, shape index: {}]
  %s2 = sld [smem:[#allocation0]]
  $region2: #{tpu_custom_call.1} parent=0
    _
  %s4 = ssub.s32 1, %s2
  %s5 = scalar_select 0, %s4, %s2
  %s7 = sshll.u32 1, 14
  %s8 = sxor.u32 4294967295, %s7
  %s11 = sshll.u32 3, 24
  %s12 = sxor.u32 4294967295, %s11
  %s13 = sand.u32 0, %s12
  %s15 = sor.u32 %s13, 0
  %18 = dma.general %s0, 128, %s1, [#allocation2], [#allocation3], [#allocation4], %s15, 0
  %s19 = smul.u32 2, 4
  %s20 = smul.u32 %s19, 1
  %s21 = sshll.u32 %s20, 4
  %22 = dma.done [#allocation2], %s21
  %23 = vsyncmov [#allocation2]
  %s24 = vpop.sfrf %23
  %p25 = scmp.eq.s32.totalorder %s24, 0
  %p26 = pneg %p25
  %28 = shalt.err (%p26)

</llo_original>
